<compile_context>
chip_gen: v5e
topology: v5e:2x2
jax: 0.10.0
libtpu: 0.0.40
codegen_flags: <defaults>
</compile_context>

<pallas_src>
import numpy as np
import jax
import jax.numpy as jnp
from jax.experimental import pallas as pl
from jax.experimental.pallas import tpu as pltpu

# ----- deterministic "parameters" (the module's fixed stain matrices) -------
RGB_FROM_HED_NP = np.array([[0.65, 0.70, 0.29],
                            [0.07, 0.99, 0.11],
                            [0.27, 0.57, 0.78]], dtype=np.float64)
HED_FROM_RGB_NP = np.linalg.inv(RGB_FROM_HED_NP)

_LOG_ADJUST = float(np.log(1e-6))          # negative (separate_stains scale)

# rgb -> hed matrix with the 1/log(1e-6) scale folded in (compile-time floats).
M_INV_SCALED = tuple(tuple(float(HED_FROM_RGB_NP[i, j] / _LOG_ADJUST) for j in range(3))
                     for i in range(3))
# hed -> rgb matrix (python floats, weakly typed).
M_FWD = tuple(tuple(float(v) for v in row) for row in RGB_FROM_HED_NP)
# D-channel combine coefficients carry no jitter -> compile-time constants.
CD = tuple(float(_LOG_ADJUST * M_FWD[2][c]) for c in range(3))

# uint8 fused-path constants:
#   log(x/255) = log(x) - log(255)  =>  off_k = -log(255) * sum_i MIS[i][k]
#   float->uint8 scale (torchvision convert_image_dtype): *(255 + 1 - 1e-3)
_U8_MAX = 255.0
_U8_OUT_SCALE = _U8_MAX + 1.0 - 1e-3
OFF_U8 = tuple(float(-np.log(_U8_MAX) * sum(M_INV_SCALED[i][k] for i in range(3)))
               for k in range(3))

ALPHA = (0.95, 1.05)
BETA = (-0.05, 0.05)


def _make_hed_jitter_kernel(uint8_io: bool):
    """Builds the elementwise HED-jitter kernel, specialized on the I/O dtype."""
    in_floor = _U8_MAX * 1e-6 if uint8_io else 1e-6
    out_cap = _U8_OUT_SCALE if uint8_io else 1.0
    off = OFF_U8 if uint8_io else (0.0, 0.0, 0.0)

    def kernel(coef_ref, img_ref, out_ref):
        # coef_ref : SMEM (9,) f32 = [cH_r,cH_g,cH_b, cE_r,cE_g,cE_b, b_r,b_g,b_b]
        # img_ref  : VMEM (3, BH, W)  uint8 or f32 RGB
        # out_ref  : VMEM (3, BH, W)  same dtype
        def chan_log(c):
            x = img_ref[c]
            xf = x.astype(jnp.float32) if uint8_io else x
            return jnp.log(jnp.maximum(xf, in_floor))

        # ---- rgb2hed (skimage separate_stains), 1/log(1e-6) folded in ------
        lr, lg, lb = chan_log(0), chan_log(1), chan_log(2)

        def stain(k):
            s = (M_INV_SCALED[0][k] * lr + M_INV_SCALED[1][k] * lg
                 + M_INV_SCALED[2][k] * lb)
            if off[k] != 0.0:          # uint8 path: fold the /255 into the sum
                s = s + off[k]
            return jnp.maximum(s, 0.0)

        h, e, d = stain(0), stain(1), stain(2)

        # ---- jitter + hed2rgb (combine_stains), jitter & output scale folded
        for c in range(3):
            log_c = h * coef_ref[c] + e * coef_ref[3 + c] + d * CD[c] + coef_ref[6 + c]
            val = jnp.minimum(jnp.exp(log_c), out_cap)   # exp >= 0: no lower clip
            out_ref[c] = val.astype(jnp.uint8) if uint8_io else val

    return kernel


def _round_up(x, m):
    return ((x + m - 1) // m) * m


def _choose_block_rows(H, W, sub_mult, target_px):
    """Block rows: sublane-aligned, ~target_px pixels, >=2 grid steps if possible."""
    bh = _round_up(max(1, min(H, target_px // max(W, 1))), sub_mult)
    if 2 * bh > H:
        # Fewer than two full blocks at the target size: split in two when we
        # can (keeps both v7x TensorCores busy), otherwise take the whole image
        # (full-dim blocks are exempt from the sublane-multiple constraint).
        half = _round_up(-(-H // 2), sub_mult)
        bh = half if half < H else H
    return min(bh, H)


def hed_jitter_forward(image, target, key, alpha=ALPHA, beta=BETA):
    """JAX/Pallas equivalent of HEDJitter.forward(image, target)."""
    orig_dtype = image.dtype
    C, H, W = image.shape
    assert C == 3, "HEDJitter expects an RGB (3, H, W) image"

    is_int = jnp.issubdtype(orig_dtype, jnp.integer)
    uint8_io = orig_dtype == jnp.uint8           # fully fused uint8 I/O path

    # --- random jitter (module samples on host; here via jax.random) --------
    k1, k2, k3, k4 = jax.random.split(key, 4)
    a_h = jax.random.uniform(k1, (), jnp.float32, alpha[0], alpha[1])
    a_e = jax.random.uniform(k2, (), jnp.float32, alpha[0], alpha[1])
    b_h = jax.random.uniform(k3, (), jnp.float32, beta[0], beta[1])
    b_e = jax.random.uniform(k4, (), jnp.float32, beta[0], beta[1])

    # Fold jitter (and the float->uint8 output scale) into 9 SMEM coefficients:
    #   out_c = min(exp(h*cH_c + e*cE_c + d*CD_c + bias_c), cap)
    row_h = jnp.asarray([_LOG_ADJUST * M_FWD[0][c] for c in range(3)], jnp.float32)
    row_e = jnp.asarray([_LOG_ADJUST * M_FWD[1][c] for c in range(3)], jnp.float32)
    bias = row_h * b_h + row_e * b_e
    if uint8_io:
        bias = bias + np.float32(np.log(_U8_OUT_SCALE))
    coefs = jnp.concatenate([row_h * a_h, row_e * a_e, bias]).astype(jnp.float32)

    # --- kernel input: tile the original (3, H, W) directly (no pad/slice) --
    if uint8_io:
        x = image
        kern_dtype = jnp.uint8
        sub_mult, target_px = 32, 1024 * 128     # 8-bit sublane multiple is 32
    elif is_int:
        # Rare non-uint8 integer path: dtype-max scaling done in the wrapper.
        # TODO(synk): fuse other integer widths (int16/int32) like the uint8 path.
        maxv = float(jnp.iinfo(orig_dtype).max)
        x = image.astype(jnp.float32) * (1.0 / maxv)
        kern_dtype = jnp.float32
        sub_mult, target_px = 8, 512 * 128
    else:
        x = image if orig_dtype == jnp.float32 else image.astype(jnp.float32)
        kern_dtype = jnp.float32
        sub_mult, target_px = 8, 512 * 128

    bh = _choose_block_rows(H, W, sub_mult, target_px)
    n_steps = pl.cdiv(H, bh)                     # ragged last block handled by Pallas

    out = pl.pallas_call(
        _make_hed_jitter_kernel(uint8_io),
        out_shape=jax.ShapeDtypeStruct((3, H, W), kern_dtype),
        grid=(n_steps,),
        in_specs=[
            pl.BlockSpec(memory_space=pltpu.MemorySpace.SMEM),   # folded jitter coefs
            pl.BlockSpec((3, bh, W), lambda i: (0, i, 0)),       # image row blocks
        ],
        out_specs=pl.BlockSpec((3, bh, W), lambda i: (0, i, 0)),
        compiler_params=pltpu.CompilerParams(
            dimension_semantics=("parallel",),
            vmem_limit_bytes=32 * 1024 * 1024,
        ),
    )(coefs, x)

    # --- dtype round trip for the non-fused paths ---------------------------
    if uint8_io:
        return out, target
    if is_int:
        maxv = float(jnp.iinfo(orig_dtype).max)
        out = (out * (maxv + 1.0 - 1e-3)).astype(orig_dtype)
    else:
        out = out.astype(orig_dtype)
    return out, target


def _reference_f32(image_f, a_h, a_e, b_h, b_e):
    """Pure-JAX mirror of skimage rgb2hed -> jitter -> hed2rgb (unfused order)."""
    MI = tuple(tuple(float(HED_FROM_RGB_NP[i, j]) for j in range(3)) for i in range(3))
    r = jnp.log(jnp.maximum(image_f[0], 1e-6)) / _LOG_ADJUST
    g = jnp.log(jnp.maximum(image_f[1], 1e-6)) / _LOG_ADJUST
    b = jnp.log(jnp.maximum(image_f[2], 1e-6)) / _LOG_ADJUST
    h = jnp.maximum(MI[0][0] * r + MI[1][0] * g + MI[2][0] * b, 0.0)
    e = jnp.maximum(MI[0][1] * r + MI[1][1] * g + MI[2][1] * b, 0.0)
    d = jnp.maximum(MI[0][2] * r + MI[1][2] * g + MI[2][2] * b, 0.0)
    h = h * a_h + b_h
    e = e * a_e + b_e
    outs = []
    for c in range(3):
        log_c = ((_LOG_ADJUST * M_FWD[0][c]) * h + (_LOG_ADJUST * M_FWD[1][c]) * e
                 + (_LOG_ADJUST * M_FWD[2][c]) * d)
        outs.append(jnp.clip(jnp.exp(log_c), 0.0, 1.0))
    return jnp.stack(outs, axis=0)


if __name__ == "__main__":
    key = jax.random.PRNGKey(0)
    k_img1, k_img2, k_img3, k_jit = jax.random.split(key, 4)
    target = {"boxes": jnp.zeros((1, 4), jnp.float32)}

    # Same jitter scalars the wrapper will draw from k_jit.
    kk1, kk2, kk3, kk4 = jax.random.split(k_jit, 4)
    a_h = jax.random.uniform(kk1, (), jnp.float32, ALPHA[0], ALPHA[1])
    a_e = jax.random.uniform(kk2, (), jnp.float32, ALPHA[0], ALPHA[1])
    b_h = jax.random.uniform(kk3, (), jnp.float32, BETA[0], BETA[1])
    b_e = jax.random.uniform(kk4, (), jnp.float32, BETA[0], BETA[1])

    # 1) tiny float32 image: two even (3, 8, 16) blocks (megacore-friendly grid).
    img_small = jax.random.uniform(k_img1, (3, 16, 16), jnp.float32)
    out_small, _ = hed_jitter_forward(img_small, target, k_jit)
    out_small = jax.block_until_ready(out_small)
    ref_small = _reference_f32(img_small, a_h, a_e, b_h, b_e)
    np.testing.assert_allclose(np.asarray(out_small), np.asarray(ref_small),
                               rtol=1e-4, atol=1e-4)

    # 2) float32 image with a ragged last block (H=100, bh=56 -> 2 grid steps).
    img_rag = jax.random.uniform(k_img2, (3, 100, 256), jnp.float32)
    out_rag, _ = hed_jitter_forward(img_rag, target, k_jit)
    out_rag = jax.block_until_ready(out_rag)
    ref_rag = _reference_f32(img_rag, a_h, a_e, b_h, b_e)
    np.testing.assert_allclose(np.asarray(out_rag), np.asarray(ref_rag),
                               rtol=1e-4, atol=1e-4)

    # 3) uint8 image, fused uint8 I/O, single full block.
    img_u8s = (jax.random.uniform(k_img1, (3, 16, 16), jnp.float32) * 255.0).astype(jnp.uint8)
    out_u8s, _ = hed_jitter_forward(img_u8s, target, k_jit)
    out_u8s = jax.block_until_ready(out_u8s)
    assert out_u8s.dtype == jnp.uint8 and out_u8s.shape == (3, 16, 16)
    ref_u8s = (_reference_f32(img_u8s.astype(jnp.float32) / 255.0,
                              a_h, a_e, b_h, b_e) * _U8_OUT_SCALE).astype(jnp.uint8)
    np.testing.assert_allclose(np.asarray(out_u8s).astype(np.int32),
                               np.asarray(ref_u8s).astype(np.int32), atol=1)

    # 4) uint8 image, two blocks (bh=64 over H=96) with a ragged tail.
    img_u8b = (jax.random.uniform(k_img3, (3, 96, 128), jnp.float32) * 255.0).astype(jnp.uint8)
    out_u8b, _ = hed_jitter_forward(img_u8b, target, k_jit)
    out_u8b = jax.block_until_ready(out_u8b)
    ref_u8b = (_reference_f32(img_u8b.astype(jnp.float32) / 255.0,
                              a_h, a_e, b_h, b_e) * _U8_OUT_SCALE).astype(jnp.uint8)
    np.testing.assert_allclose(np.asarray(out_u8b).astype(np.int32),
                               np.asarray(ref_u8b).astype(np.int32), atol=1)

    print("KERNEL_OK")
</pallas_src>

<mosaic_0001>
module attributes {stable_mosaic.version = 11 : i64} {
  func.func @kernel(%arg0: i32, %arg1: memref<9xf32, #tpu.memory_space<smem>>, %arg2: memref<3x8x16xf32, #tpu.memory_space<vmem>>, %arg3: memref<3x8x16xf32, #tpu.memory_space<vmem>>) attributes {dimension_semantics = [#tpu.dimension_semantics<parallel>], iteration_bounds = array<i64: 2>, scalar_prefetch = 0 : i64, scratch_operands = 0 : i64, tpu.core_type = #tpu.core_type<tc>, window_params = [{transform_indices = @transform_0, window_bounds = array<i64: 9>}, {transform_indices = @transform_1, window_bounds = array<i64: 3, 8, 16>}, {transform_indices = @transform_2, window_bounds = array<i64: 3, 8, 16>}]} {
    %c0 = arith.constant 0 : index
    %c0_0 = arith.constant 0 : index
    %c0_1 = arith.constant 0 : index
    %0 = vector.load %arg2[%c0, %c0_0, %c0_1] : memref<3x8x16xf32, #tpu.memory_space<vmem>>, vector<1x8x16xf32>
    %1 = vector.shape_cast %0 : vector<1x8x16xf32> to vector<8x16xf32>
    %cst = arith.constant 9.99999997E-7 : f32
    %2 = vector.broadcast %cst : f32 to vector<8x16xf32>
    %3 = arith.maximumf %1, %2 : vector<8x16xf32>
    %4 = math.log %3 : vector<8x16xf32>
    %c1 = arith.constant 1 : index
    %c0_2 = arith.constant 0 : index
    %c0_3 = arith.constant 0 : index
    %5 = vector.load %arg2[%c1, %c0_2, %c0_3] : memref<3x8x16xf32, #tpu.memory_space<vmem>>, vector<1x8x16xf32>
    %6 = vector.shape_cast %5 : vector<1x8x16xf32> to vector<8x16xf32>
    %cst_4 = arith.constant 9.99999997E-7 : f32
    %7 = vector.broadcast %cst_4 : f32 to vector<8x16xf32>
    %8 = arith.maximumf %6, %7 : vector<8x16xf32>
    %9 = math.log %8 : vector<8x16xf32>
    %c2 = arith.constant 2 : index
    %c0_5 = arith.constant 0 : index
    %c0_6 = arith.constant 0 : index
    %10 = vector.load %arg2[%c2, %c0_5, %c0_6] : memref<3x8x16xf32, #tpu.memory_space<vmem>>, vector<1x8x16xf32>
    %11 = vector.shape_cast %10 : vector<1x8x16xf32> to vector<8x16xf32>
    %cst_7 = arith.constant 9.99999997E-7 : f32
    %12 = vector.broadcast %cst_7 : f32 to vector<8x16xf32>
    %13 = arith.maximumf %11, %12 : vector<8x16xf32>
    %14 = math.log %13 : vector<8x16xf32>
    %cst_8 = arith.constant -0.135932922 : f32
    %15 = vector.broadcast %cst_8 : f32 to vector<8x16xf32>
    %16 = arith.mulf %15, %4 : vector<8x16xf32>
    %cst_9 = arith.constant 0.0047705844 : f32
    %17 = vector.broadcast %cst_9 : f32 to vector<8x16xf32>
    %18 = arith.mulf %17, %9 : vector<8x16xf32>
    %19 = arith.addf %16, %18 : vector<8x16xf32>
    %cst_10 = arith.constant 0.0435675085 : f32
    %20 = vector.broadcast %cst_10 : f32 to vector<8x16xf32>
    %21 = arith.mulf %20, %14 : vector<8x16xf32>
    %22 = arith.addf %19, %21 : vector<8x16xf32>
    %cst_11 = arith.constant 0.000000e+00 : f32
    %23 = vector.broadcast %cst_11 : f32 to vector<8x16xf32>
    %24 = arith.maximumf %22, %23 : vector<8x16xf32>
    %cst_12 = arith.constant 0.0729382187 : f32
    %25 = vector.broadcast %cst_12 : f32 to vector<8x16xf32>
    %26 = arith.mulf %25, %4 : vector<8x16xf32>
    %cst_13 = arith.constant -0.0821345224 : f32
    %27 = vector.broadcast %cst_13 : f32 to vector<8x16xf32>
    %28 = arith.mulf %27, %9 : vector<8x16xf32>
    %29 = arith.addf %26, %28 : vector<8x16xf32>
    %cst_14 = arith.constant 0.0347735398 : f32
    %30 = vector.broadcast %cst_14 : f32 to vector<8x16xf32>
    %31 = arith.mulf %30, %14 : vector<8x16xf32>
    %32 = arith.addf %29, %31 : vector<8x16xf32>
    %cst_15 = arith.constant 0.000000e+00 : f32
    %33 = vector.broadcast %cst_15 : f32 to vector<8x16xf32>
    %34 = arith.maximumf %32, %33 : vector<8x16xf32>
    %cst_16 = arith.constant 0.0402530059 : f32
    %35 = vector.broadcast %cst_16 : f32 to vector<8x16xf32>
    %36 = arith.mulf %35, %4 : vector<8x16xf32>
    %cst_17 = arith.constant 0.00980939529 : f32
    %37 = vector.broadcast %cst_17 : f32 to vector<8x16xf32>
    %38 = arith.mulf %37, %9 : vector<8x16xf32>
    %39 = arith.addf %36, %38 : vector<8x16xf32>
    %cst_18 = arith.constant -0.113900103 : f32
    %40 = vector.broadcast %cst_18 : f32 to vector<8x16xf32>
    %41 = arith.mulf %40, %14 : vector<8x16xf32>
    %42 = arith.addf %39, %41 : vector<8x16xf32>
    %cst_19 = arith.constant 0.000000e+00 : f32
    %43 = vector.broadcast %cst_19 : f32 to vector<8x16xf32>
    %44 = arith.maximumf %42, %43 : vector<8x16xf32>
    %c0_20 = arith.constant 0 : index
    %45 = memref.load %arg1[%c0_20] : memref<9xf32, #tpu.memory_space<smem>>
    %46 = vector.broadcast %45 : f32 to vector<8x16xf32>
    %47 = arith.mulf %24, %46 : vector<8x16xf32>
    %c3 = arith.constant 3 : index
    %48 = memref.load %arg1[%c3] : memref<9xf32, #tpu.memory_space<smem>>
    %49 = vector.broadcast %48 : f32 to vector<8x16xf32>
    %50 = arith.mulf %34, %49 : vector<8x16xf32>
    %51 = arith.addf %47, %50 : vector<8x16xf32>
    %cst_21 = arith.constant -3.73018789 : f32
    %52 = vector.broadcast %cst_21 : f32 to vector<8x16xf32>
    %53 = arith.mulf %44, %52 : vector<8x16xf32>
    %54 = arith.addf %51, %53 : vector<8x16xf32>
    %c6 = arith.constant 6 : index
    %55 = memref.load %arg1[%c6] : memref<9xf32, #tpu.memory_space<smem>>
    %56 = vector.broadcast %55 : f32 to vector<8x16xf32>
    %57 = arith.addf %54, %56 : vector<8x16xf32>
    %58 = math.exp %57 : vector<8x16xf32>
    %cst_22 = arith.constant 1.000000e+00 : f32
    %59 = vector.broadcast %cst_22 : f32 to vector<8x16xf32>
    %60 = arith.minimumf %58, %59 : vector<8x16xf32>
    %c0_23 = arith.constant 0 : index
    %c0_24 = arith.constant 0 : index
    %c0_25 = arith.constant 0 : index
    %61 = vector.load %arg3[%c0_23, %c0_24, %c0_25] : memref<3x8x16xf32, #tpu.memory_space<vmem>>, vector<1x8x16xf32>
    %62 = vector.shape_cast %61 : vector<1x8x16xf32> to vector<8x16xf32>
    %63 = vector.shape_cast %60 : vector<8x16xf32> to vector<1x8x16xf32>
    tpu.vector_store %arg3[%c0_23, %c0_24, %c0_25], %63 {strides = array<i32>} : memref<3x8x16xf32, #tpu.memory_space<vmem>>, vector<1x8x16xf32>,
    %c1_26 = arith.constant 1 : index
    %64 = memref.load %arg1[%c1_26] : memref<9xf32, #tpu.memory_space<smem>>
    %65 = vector.broadcast %64 : f32 to vector<8x16xf32>
    %66 = arith.mulf %24, %65 : vector<8x16xf32>
    %c4 = arith.constant 4 : index
    %67 = memref.load %arg1[%c4] : memref<9xf32, #tpu.memory_space<smem>>
    %68 = vector.broadcast %67 : f32 to vector<8x16xf32>
    %69 = arith.mulf %34, %68 : vector<8x16xf32>
    %70 = arith.addf %66, %69 : vector<8x16xf32>
    %cst_27 = arith.constant -7.87484121 : f32
    %71 = vector.broadcast %cst_27 : f32 to vector<8x16xf32>
    %72 = arith.mulf %44, %71 : vector<8x16xf32>
    %73 = arith.addf %70, %72 : vector<8x16xf32>
    %c7 = arith.constant 7 : index
    %74 = memref.load %arg1[%c7] : memref<9xf32, #tpu.memory_space<smem>>
    %75 = vector.broadcast %74 : f32 to vector<8x16xf32>
    %76 = arith.addf %73, %75 : vector<8x16xf32>
    %77 = math.exp %76 : vector<8x16xf32>
    %cst_28 = arith.constant 1.000000e+00 : f32
    %78 = vector.broadcast %cst_28 : f32 to vector<8x16xf32>
    %79 = arith.minimumf %77, %78 : vector<8x16xf32>
    %c1_29 = arith.constant 1 : index
    %c0_30 = arith.constant 0 : index
    %c0_31 = arith.constant 0 : index
    %80 = vector.load %arg3[%c1_29, %c0_30, %c0_31] : memref<3x8x16xf32, #tpu.memory_space<vmem>>, vector<1x8x16xf32>
    %81 = vector.shape_cast %80 : vector<1x8x16xf32> to vector<8x16xf32>
    %82 = vector.shape_cast %79 : vector<8x16xf32> to vector<1x8x16xf32>
    tpu.vector_store %arg3[%c1_29, %c0_30, %c0_31], %82 {strides = array<i32>} : memref<3x8x16xf32, #tpu.memory_space<vmem>>, vector<1x8x16xf32>,
    %c2_32 = arith.constant 2 : index
    %83 = memref.load %arg1[%c2_32] : memref<9xf32, #tpu.memory_space<smem>>
    %84 = vector.broadcast %83 : f32 to vector<8x16xf32>
    %85 = arith.mulf %24, %84 : vector<8x16xf32>
    %c5 = arith.constant 5 : index
    %86 = memref.load %arg1[%c5] : memref<9xf32, #tpu.memory_space<smem>>
    %87 = vector.broadcast %86 : f32 to vector<8x16xf32>
    %88 = arith.mulf %34, %87 : vector<8x16xf32>
    %89 = arith.addf %85, %88 : vector<8x16xf32>
    %cst_33 = arith.constant -10.7760983 : f32
    %90 = vector.broadcast %cst_33 : f32 to vector<8x16xf32>
    %91 = arith.mulf %44, %90 : vector<8x16xf32>
    %92 = arith.addf %89, %91 : vector<8x16xf32>
    %c8 = arith.constant 8 : index
    %93 = memref.load %arg1[%c8] : memref<9xf32, #tpu.memory_space<smem>>
    %94 = vector.broadcast %93 : f32 to vector<8x16xf32>
    %95 = arith.addf %92, %94 : vector<8x16xf32>
    %96 = math.exp %95 : vector<8x16xf32>
    %cst_34 = arith.constant 1.000000e+00 : f32
    %97 = vector.broadcast %cst_34 : f32 to vector<8x16xf32>
    %98 = arith.minimumf %96, %97 : vector<8x16xf32>
    %c2_35 = arith.constant 2 : index
    %c0_36 = arith.constant 0 : index
    %c0_37 = arith.constant 0 : index
    %99 = vector.load %arg3[%c2_35, %c0_36, %c0_37] : memref<3x8x16xf32, #tpu.memory_space<vmem>>, vector<1x8x16xf32>
    %100 = vector.shape_cast %99 : vector<1x8x16xf32> to vector<8x16xf32>
    %101 = vector.shape_cast %98 : vector<8x16xf32> to vector<1x8x16xf32>
    tpu.vector_store %arg3[%c2_35, %c0_36, %c0_37], %101 {strides = array<i32>} : memref<3x8x16xf32, #tpu.memory_space<vmem>>, vector<1x8x16xf32>,
    return
  }
  func.func @transform_0(%arg0: i32) -> i32 {
    %c0_i32 = arith.constant 0 : i32
    %c0_i32_0 = arith.constant 0 : i32
    return %c0_i32 : i32
  }
  func.func @transform_1(%arg0: i32) -> (i32, i32, i32) {
    %c0_i32 = arith.constant 0 : i32
    %c0_i32_0 = arith.constant 0 : i32
    %c0_i32_1 = arith.constant 0 : i32
    return %c0_i32, %arg0, %c0_i32_0 : i32, i32, i32
  }
  func.func @transform_2(%arg0: i32) -> (i32, i32, i32) {
    %c0_i32 = arith.constant 0 : i32
    %c0_i32_0 = arith.constant 0 : i32
    %c0_i32_1 = arith.constant 0 : i32
    return %c0_i32, %arg0, %c0_i32_0 : i32, i32, i32
  }
}

</mosaic_0001>

<llo_original>
// kernel: tpu_custom_call.1
$region0: #{tpu_custom_call.1}
  #allocation0 [shape = 'u32[]', space=smem, size = 0x4, offset = 0x4, fixed_abs, tag = 'smem constant byte address 0x4 - core index']
  #allocation1 [shape = 'u32[72,128]{1,0:T(1,128)}', space=vmem, size = 0x9000, scoped, tag = 'internal scratch']
  %s0 = inlined_call_operand.hbm [shape: f32[9], index: 0, kind: input, shape index: {}]
  %s1 = inlined_call_operand.hbm [shape: f32[3,16,16], index: 1, kind: input, shape index: {}]
  %s2 = inlined_call_operand.hbm [shape: f32[3,16,16], index: 2, kind: output, shape index: {}]
  %s3 = sld [smem:[#allocation0]]
  $region49: #{tpu_custom_call.1} parent=0
    _
  %s5 = ssub.s32 1, %s3
  %s6 = scalar_select 0, %s5, %s3
  $region1: #{tpu_custom_call.1} parent=0
    #allocation2 [shape = 'u8[512]{0}', space=smem, size = 0x200, scoped, tag = 'input window, operand 0, single buffered']
    #allocation3 [shape = 's32[2]{0}', space=sflag, size = 0x8, scoped, tag = 'scoped memory for tpu_custom_call.1']
    #allocation4 [shape = 's32[2]{0}', space=sflag, size = 0x8, scoped, tag = 'scoped memory for tpu_custom_call.1']
    #allocation5 [shape = 's32[2]{0}', space=sflag, size = 0x8, scoped, tag = 'scoped memory for tpu_custom_call.1']
    #allocation6 [shape = 'u8[24576]{0}', space=vmem, size = 0x6000, scoped, tag = 'input window, operand 1']
    #allocation7 [shape = 'u8[24576]{0}', space=vmem, size = 0x6000, scoped, tag = 'output window, operand 0']
    %7 = vsyncpa [#allocation5], 0
    %8 = vsyncpa [#allocation3], 0
    %s9 = scalar_lea.sflag [#allocation3], 1
    %10 = vsyncpa %s9, 0
    %11 = vsyncpa [#allocation4], 0
    %s12 = scalar_lea.sflag [#allocation4], 1
    %13 = vsyncpa %s12, 0
    loop: start=0, step=1, limit=4
    $region2: #{tpu_custom_call.1} parent=1 // loop_pre_header
      _
    $region3: #{tpu_custom_call.1} parent=1 // loop_header
      %s15 = sphi 0, %s19
      %p16 = scmp.ge.s32.totalorder %s15, 4
      %s23 = sphi 0, %s23
      %s25 = sphi 0, %s23
      %s26 = sphi 0, %s25
      %s40 = sphi 0, %s26
      %s46 = sphi 0, %s48
      %s49 = sphi 0, %s46
      %s50 = sphi 0, %s49
      %s66 = sphi 0, %s50
      %s72 = sphi 0, %s74
      %s75 = sphi 0, %s72
      %s76 = sphi 0, %s75
      %s92 = sphi 0, %s76
    $region4: #{tpu_custom_call.1} parent=1 // loop_header_branch
      %18 = sbr.rel (%p16) target = $region8
    $region5: #{tpu_custom_call.1} parent=1 // loop_body
      %s20 = ssub.s32 %s15, 1
      %s21 = ssub.s32 %s15, 2
      %s22 = sadd.s32 %s15, 1
      %s24 = sadd.s32 %s23, 1
      %p27 = scmp.eq.s32.totalorder %s15, 1
      %p28 = scmp.ne.s32.totalorder %s23, %s25
      %p29 = scmp.eq.s32.totalorder %s15, 0
      %p30 = por %p28, %p29
      %p31 = scmp.ne.s32.totalorder %s23, %s25
      %p32 = scmp.eq.s32.totalorder %s20, 1
      %p33 = por %p31, %p32
      %p34 = scmp.ne.s32.totalorder %s25, %s26
      %p35 = scmp.eq.s32.totalorder %s20, 0
      %p36 = por %p34, %p35
      %p37 = scmp.ne.s32.totalorder %s25, %s26
      %p38 = scmp.eq.s32.totalorder %s21, 1
      %p39 = por %p37, %p38
      %p41 = scmp.ne.s32.totalorder %s26, %s40
      %p42 = scmp.eq.s32.totalorder %s21, 0
      %p43 = por %p41, %p42
      %s44 = ssub.s32 %s15, %s22
      %p45 = scmp.eq.s32.totalorder %s44, 0
      %s47 = sadd.s32 %s46, 1
      %s48 = scalar_select %p45, %s46, %s47
      %p51 = pneg %p45
      %p52 = scmp.eq.s32.totalorder %s15, 1
      %p53 = por %p51, %p52
      %p54 = scmp.ne.s32.totalorder %s46, %s49
      %p55 = scmp.eq.s32.totalorder %s15, 0
      %p56 = por %p54, %p55
      %p57 = scmp.ne.s32.totalorder %s46, %s49
      %p58 = scmp.eq.s32.totalorder %s20, 1
      %p59 = por %p57, %p58
      %p60 = scmp.ne.s32.totalorder %s49, %s50
      %p61 = scmp.eq.s32.totalorder %s20, 0
      %p62 = por %p60, %p61
      %p63 = scmp.ne.s32.totalorder %s49, %s50
      %p64 = scmp.eq.s32.totalorder %s21, 1
      %p65 = por %p63, %p64
      %p67 = scmp.ne.s32.totalorder %s50, %s66
      %p68 = scmp.eq.s32.totalorder %s21, 0
      %p69 = por %p67, %p68
      %s70 = ssub.s32 %s15, %s22
      %p71 = scmp.eq.s32.totalorder %s70, 0
      %s73 = sadd.s32 %s72, 1
      %s74 = scalar_select %p71, %s72, %s73
      %p77 = pneg %p71
      %p78 = scmp.eq.s32.totalorder %s15, 1
      %p79 = por %p77, %p78
      %p80 = scmp.ne.s32.totalorder %s72, %s75
      %p81 = scmp.eq.s32.totalorder %s15, 0
      %p82 = por %p80, %p81
      %p83 = scmp.ne.s32.totalorder %s72, %s75
      %p84 = scmp.eq.s32.totalorder %s20, 1
      %p85 = por %p83, %p84
      %p86 = scmp.ne.s32.totalorder %s75, %s76
      %p87 = scmp.eq.s32.totalorder %s20, 0
      %p88 = por %p86, %p87
      %p89 = scmp.ne.s32.totalorder %s75, %s76
      %p90 = scmp.eq.s32.totalorder %s21, 1
      %p91 = por %p89, %p90
      %p93 = scmp.ne.s32.totalorder %s76, %s92
      %p94 = scmp.eq.s32.totalorder %s21, 0
      %p95 = por %p93, %p94
      %p96 = scmp.le.s32.totalorder 1, %s15
      %p97 = scmp.lt.s32.totalorder %s15, 3
      %p98 = pnand %p96, %p97
      %p99 = pneg %p98
      // Predicated region
      $region9: #{tpu_custom_call.1} parent=5 // pred_check
        _
      $region10: #{tpu_custom_call.1} parent=5 // pred_check_branch
        %101 = sbr.rel (%p98) target = $region12
      $region11: #{tpu_custom_call.1} parent=5 // pred_region
        %s102 = ssub.s32 %s15, 1
        // Predicated region
        $region13: #{tpu_custom_call.1} parent=11 // pred_check
          %p103 = pneg %p36
        $region14: #{tpu_custom_call.1} parent=11 // pred_check_branch
          %105 = sbr.rel (%p103) target = $region16
        $region15: #{tpu_custom_call.1} parent=11 // pred_region
          %107 = vsyncadd [#allocation5], 0
          %s109 = sshll.u32 %s0, 4
          %s110 = int_to_ptr.hbm [resolvable:$true] %s109
          %112 = dma.hbm_to_smem %s110, 16, [#allocation2], [#allocation5]
        $region16: #{tpu_custom_call.1} parent=11 // pred_fallthru
          _
      $region12: #{tpu_custom_call.1} parent=5 // pred_fallthru
        _
      %p113 = scmp.lt.s32.totalorder %s15, 2
      // Predicated region
      $region17: #{tpu_custom_call.1} parent=5 // pred_check
        %p114 = pneg %p113
      $region18: #{tpu_custom_call.1} parent=5 // pred_check_branch
        %116 = sbr.rel (%p114) target = $region20
      $region19: #{tpu_custom_call.1} parent=5 // pred_region
        // Predicated region
        $region21: #{tpu_custom_call.1} parent=19 // pred_check
          %p117 = pneg %p56
        $region22: #{tpu_custom_call.1} parent=19 // pred_check_branch
          %119 = sbr.rel (%p117) target = $region24
        $region23: #{tpu_custom_call.1} parent=19 // pred_region
          %s120 = sand.u32 %s46, 1
          %s121 = scalar_lea.sflag [#allocation3], %s120
          %s122 = sand.u32 %s46, 1
          %s123 = smul.addr %s122, 24
          %s124 = scalar_lea.vmem [#allocation6], %s123
          %126 = vsyncadd %s121, 0
          %s127 = smul.addr %s15, 8
          %s128 = scalar_lea.hbm %s1, %s127
          %s129 = sshll.u32 %s128, 4
          %s130 = int_to_ptr.hbm [resolvable:$true] %s129
          %s131 = sshll.u32 %s124, 4
          %s132 = int_to_ptr.vmem [resolvable:$true] %s131
          %137 = dma.hbm_to_vmem [thread:$0]  %s130, 384, %s132, %s121, 256, 128, 8
        $region24: #{tpu_custom_call.1} parent=19 // pred_fallthru
          _
      $region20: #{tpu_custom_call.1} parent=5 // pred_fallthru
        _
      %p138 = scmp.le.s32.totalorder 1, %s15
      %p139 = scmp.lt.s32.totalorder %s15, 3
      %p140 = pnand %p138, %p139
      %p141 = pneg %p140
      // Predicated region
      $region25: #{tpu_custom_call.1} parent=5 // pred_check
        _
      $region26: #{tpu_custom_call.1} parent=5 // pred_check_branch
        %143 = sbr.rel (%p140) target = $region28
      $region27: #{tpu_custom_call.1} parent=5 // pred_region
        %s144 = ssub.s32 %s15, 1
        // Predicated region
        $region29: #{tpu_custom_call.1} parent=27 // pred_check
          %p145 = pneg %p36
        $region30: #{tpu_custom_call.1} parent=27 // pred_check_branch
          %147 = sbr.rel (%p145) target = $region32
        $region31: #{tpu_custom_call.1} parent=27 // pred_region
          %149 = dma.done [#allocation5], 16
        $region32: #{tpu_custom_call.1} parent=27 // pred_fallthru
          _
        %s150 = sand.u32 %s49, 1
        %s151 = scalar_lea.sflag [#allocation3], %s150
        %s152 = sand.u32 %s49, 1
        %s153 = smul.addr %s152, 24
        %s154 = scalar_lea.vmem [#allocation6], %s153
        // Predicated region
        $region33: #{tpu_custom_call.1} parent=27 // pred_check
          %p155 = pneg %p62
        $region34: #{tpu_custom_call.1} parent=27 // pred_check_branch
          %157 = sbr.rel (%p155) target = $region36
        $region35: #{tpu_custom_call.1} parent=27 // pred_region
          %159 = dma.done %s151, 384
        $region36: #{tpu_custom_call.1} parent=27 // pred_fallthru
          _
        %160 = sfence
        %p161 = pneg %p36
        %p162 = pneg %p33
        %s163 = sand.u32 %s49, 1
        %s164 = scalar_lea.sflag [#allocation3], %s163
        %s165 = sand.u32 %s49, 1
        %s166 = smul.addr %s165, 24
        %s167 = scalar_lea.vmem [#allocation6], %s166
        %p168 = pneg %p62
        %p169 = pneg %p59
        %p170 = pneg %p88
        %p171 = pneg %p85
        %s172 = sand.u32 %s75, 1
        %s173 = scalar_lea.sflag [#allocation4], %s172
        %s174 = sand.u32 %s75, 1
        %s175 = smul.addr %s174, 24
        %s176 = scalar_lea.vmem [#allocation7], %s175
        %v177 = vld [vmem:[%s154] sm:$0xff]
        %v178 = vmax.f32 %v177, 1e-06
        %v179 = vlog2.pop %v178
        %v180 = vmul.f32 %v179, 0.6931472
        %s181 = scalar_lea.vmem %s154, 8 [#allocation6]
        %v182 = vld [vmem:[%s181] sm:$0xff]
        %v183 = vmax.f32 %v182, 1e-06
        %v184 = vlog2.pop %v183
        %v185 = vmul.f32 %v184, 0.6931472
        %s186 = scalar_lea.vmem %s154, 16 [#allocation6]
        %v187 = vld [vmem:[%s186] sm:$0xff]
        %v188 = vmax.f32 %v187, 1e-06
        %v189 = vlog2.pop %v188
        %v190 = vmul.f32 %v189, 0.6931472
        %v191 = vmul.f32 %v180, -0.13593292
        %v192 = vmul.f32 %v185, 0.0047705844
        %v193 = vadd.f32 %v191, %v192
        %v194 = vmul.f32 %v190, 0.04356751
        %v195 = vadd.f32 %v193, %v194
        %v196 = vmax.f32 %v195, 0.0
        %v197 = vmul.f32 %v180, 0.07293822
        %v198 = vmul.f32 %v185, -0.08213452
        %v199 = vadd.f32 %v197, %v198
        %v200 = vmul.f32 %v190, 0.03477354
        %v201 = vadd.f32 %v199, %v200
        %v202 = vmax.f32 %v201, 0.0
        %v203 = vmul.f32 %v180, 0.040253006
        %v204 = vmul.f32 %v185, 0.009809395
        %v205 = vadd.f32 %v203, %v204
        %v206 = vmul.f32 %v190, -0.1139001
        %v207 = vadd.f32 %v205, %v206
        %v208 = vmax.f32 %v207, 0.0
        %s209 = sld [smem:[#allocation2]]
        %v210 = vstv %s209
        %v211 = vmul.f32 %v196, %v210
        %s212 = sld [smem:[#allocation2 + $0x3]]
        %v213 = vstv %s212
        %v214 = vmul.f32 %v202, %v213
        %v215 = vadd.f32 %v211, %v214
        %v216 = vmul.f32 %v208, -3.730188
        %v217 = vadd.f32 %v215, %v216
        %s218 = sld [smem:[#allocation2 + $0x6]]
        %v219 = vstv %s218
        %v220 = vadd.f32 %v217, %v219
        %v221 = vmul.f32 %v220, 1.442695
        %v222 = vpow.pop %v221
        %v223 = vmin.f32 %v222, 1.0
        %vm224 = vcmask 130048
        %225 = vst.msk [vmem:[%s176] sm:$0xff] %vm224, %v223
        %s226 = sld [smem:[#allocation2 + $0x1]]
        %v227 = vstv %s226
        %v228 = vmul.f32 %v196, %v227
        %s229 = sld [smem:[#allocation2 + $0x4]]
        %v230 = vstv %s229
        %v231 = vmul.f32 %v202, %v230
        %v232 = vadd.f32 %v228, %v231
        %v233 = vmul.f32 %v208, -7.874841
        %v234 = vadd.f32 %v232, %v233
        %s235 = sld [smem:[#allocation2 + $0x7]]
        %v236 = vstv %s235
        %v237 = vadd.f32 %v234, %v236
        %v238 = vmul.f32 %v237, 1.442695
        %v239 = vpow.pop %v238
        %v240 = vmin.f32 %v239, 1.0
        %s241 = scalar_lea.vmem %s176, 8 [#allocation7]
        %242 = vst.msk [vmem:[%s241] sm:$0xff] %vm224, %v240
        %s243 = sld [smem:[#allocation2 + $0x2]]
        %v244 = vstv %s243
        %v245 = vmul.f32 %v196, %v244
        %s246 = sld [smem:[#allocation2 + $0x5]]
        %v247 = vstv %s246
        %v248 = vmul.f32 %v202, %v247
        %v249 = vadd.f32 %v245, %v248
        %v250 = vmul.f32 %v208, -10.776098
        %v251 = vadd.f32 %v249, %v250
        %s252 = sld [smem:[#allocation2 + $0x8]]
        %v253 = vstv %s252
        %v254 = vadd.f32 %v251, %v253
        %v255 = vmul.f32 %v254, 1.442695
        %v256 = vpow.pop %v255
        %v257 = vmin.f32 %v256, 1.0
        %s258 = scalar_lea.vmem %s176, 16 [#allocation7]
        %259 = vst.msk [vmem:[%s258] sm:$0xff] %vm224, %v257
        %s260 = sand.u32 %s75, 1
        %s261 = scalar_lea.sflag [#allocation4], %s260
        %s262 = sand.u32 %s75, 1
        %s263 = smul.addr %s262, 24
        %s264 = scalar_lea.vmem [#allocation7], %s263
        // Predicated region
        $region37: #{tpu_custom_call.1} parent=27 // pred_check
          %p265 = pneg %p85
        $region38: #{tpu_custom_call.1} parent=27 // pred_check_branch
          %267 = sbr.rel (%p265) target = $region40
        $region39: #{tpu_custom_call.1} parent=27 // pred_region
          %269 = vsyncadd %s261, 0
          %s270 = smul.addr %s20, 8
          %s271 = scalar_lea.hbm %s2, %s270
          %s272 = sshll.u32 %s264, 4
          %s273 = int_to_ptr.vmem [resolvable:$true] %s272
          %s274 = sshll.u32 %s271, 4
          %s275 = int_to_ptr.hbm [resolvable:$true] %s274
          %280 = dma.vmem_to_hbm [thread:$0]  %s273, 384, %s275, %s261, 128, 256, 8
        $region40: #{tpu_custom_call.1} parent=27 // pred_fallthru
          _
      $region28: #{tpu_custom_call.1} parent=5 // pred_fallthru
        _
      %p281 = scmp.le.s32.totalorder 2, %s15
      // Predicated region
      $region41: #{tpu_custom_call.1} parent=5 // pred_check
        %p282 = pneg %p281
      $region42: #{tpu_custom_call.1} parent=5 // pred_check_branch
        %284 = sbr.rel (%p282) target = $region44
      $region43: #{tpu_custom_call.1} parent=5 // pred_region
        %s285 = ssub.s32 %s15, 2
        // Predicated region
        $region45: #{tpu_custom_call.1} parent=43 // pred_check
          %p286 = pneg %p91
        $region46: #{tpu_custom_call.1} parent=43 // pred_check_branch
          %288 = sbr.rel (%p286) target = $region48
        $region47: #{tpu_custom_call.1} parent=43 // pred_region
          %s289 = sand.u32 %s76, 1
          %s290 = scalar_lea.sflag [#allocation4], %s289
          %s291 = sand.u32 %s76, 1
          %s292 = smul.addr %s291, 24
          %s293 = scalar_lea.vmem [#allocation7], %s292
          %295 = dma.done %s290, 384
        $region48: #{tpu_custom_call.1} parent=43 // pred_fallthru
          _
      $region44: #{tpu_custom_call.1} parent=5 // pred_fallthru
        _
    $region6: #{tpu_custom_call.1} parent=1 // loop_footer
      %s19 = sadd.s32 1, %s15
    $region7: #{tpu_custom_call.1} parent=1 // loop_footer_branch
      %14 = sbr.rel target = $region3
    $region8: #{tpu_custom_call.1} parent=1 // loop_exit
      _
    %296 = vsyncpa [#allocation3], 1
    %s297 = scalar_lea.sflag [#allocation3], 1
    %298 = vsyncpa %s297, 1
    %299 = vsyncpa [#allocation4], 1
    %s300 = scalar_lea.sflag [#allocation4], 1
    %301 = vsyncpa %s300, 1
    %302 = vsyncpa [#allocation5], 1
    %s303 = scalar_lea.sflag [#allocation5], 1
    %304 = vsyncpa %s303, 1

</llo_original>
